<compile_context>
chip_gen: v7x
topology: tpu7x:2x2x1
jax: 0.10.0
libtpu: 0.0.40
codegen_flags: <defaults>
</compile_context>

<pallas_src>
import jax
import jax.numpy as jnp
from jax.experimental import pallas as pl
from jax.experimental.pallas import tpu as pltpu

SUBLANE = 8
TM_CAP = 1024          # max batch rows per grid step (VMEM use is tiny anyway)
SMALL_BATCH_JNP = 64   # below this, plain XLA beats the kernel launch overhead


def _cdiv(a, b):
    return -(-a // b)


def _round_up(x, m):
    return _cdiv(x, m) * m


# -----------------------------------------------------------------------------
# Kernel
# -----------------------------------------------------------------------------
def _mlp_kernel(x_ref, w1_ref, w2_ref, out_ref):
    # fc1: bias b1 is folded into w1 via the trailing ones column of x.
    h = jnp.dot(x_ref[...], w1_ref[...], preferred_element_type=jnp.float32)
    h = jnp.maximum(h, 0.0)
    # fc2: w1p[input_size, hidden] == 1.0 makes h[:, hidden] == 1 (ReLU(1)=1),
    # so row `hidden` of w2p (== b2) acts as the fc2 bias.
    q = jnp.dot(h.astype(w2_ref.dtype), w2_ref[...],
                preferred_element_type=jnp.float32)
    out_ref[...] = q.astype(out_ref.dtype)


# -----------------------------------------------------------------------------
# Packing (hoisted out of the per-forward path)
# -----------------------------------------------------------------------------
def pack_params(w1, b1, w2, b2, dtype=jnp.bfloat16):
    """Fold biases into padded weight matrices. Call once per param update."""
    input_size, hidden = w1.shape
    nb_action = w2.shape[1]
    in_pad = _round_up(input_size + 1, SUBLANE)   # +1 ones column for b1
    hid_pad = _round_up(hidden + 1, SUBLANE)      # +1 reserved lane for b2
    act_pad = _round_up(nb_action, SUBLANE)

    w1p = jnp.zeros((in_pad, hid_pad), jnp.float32)
    w1p = w1p.at[:input_size, :hidden].set(w1.astype(jnp.float32))
    w1p = w1p.at[input_size, :hidden].set(b1.astype(jnp.float32))
    w1p = w1p.at[input_size, hidden].set(1.0)     # propagates 1.0 -> b2 lane

    w2p = jnp.zeros((hid_pad, act_pad), jnp.float32)
    w2p = w2p.at[:hidden, :nb_action].set(w2.astype(jnp.float32))
    w2p = w2p.at[hidden, :nb_action].set(b2.astype(jnp.float32))
    return w1p.astype(dtype), w2p.astype(dtype)


def pack_state(state, B_pad, in_pad, dtype):
    """Append ones column (for b1) and pad to (B_pad, in_pad). Zero pad rows."""
    B, input_size = state.shape
    ones = jnp.ones((B, 1), dtype)
    x = jnp.concatenate([state.astype(dtype), ones], axis=1)
    return jnp.pad(x, ((0, B_pad - B), (0, in_pad - (input_size + 1))))


def _choose_batch_tiling(B):
    n_tiles = max(1, _cdiv(_round_up(B, SUBLANE), TM_CAP))
    if n_tiles > 1 and n_tiles % 2:
        n_tiles += 1                      # even split across v7x's 2 TensorCores
    tm = _round_up(_cdiv(B, n_tiles), SUBLANE)
    return tm, n_tiles, n_tiles * tm      # (tile rows, grid, padded batch)


# -----------------------------------------------------------------------------
# Forward passes
# -----------------------------------------------------------------------------
def network_forward_pallas(state, w1p, w2p, nb_action):
    """Pallas forward. state:(B,in) f32, w1p/w2p packed via pack_params."""
    B, _ = state.shape
    in_pad, hid_pad = w1p.shape
    act_pad = w2p.shape[1]

    tm, n_tiles, B_pad = _choose_batch_tiling(B)
    xp = pack_state(state, B_pad, in_pad, w1p.dtype)

    itemsize = jnp.dtype(w1p.dtype).itemsize
    flops = 2 * B * (in_pad * hid_pad + hid_pad * act_pad)
    bytes_accessed = (B_pad * in_pad * itemsize + w1p.size * itemsize
                      + w2p.size * itemsize + B_pad * act_pad * 4)

    out = pl.pallas_call(
        _mlp_kernel,
        out_shape=jax.ShapeDtypeStruct((B_pad, act_pad), jnp.float32),
        grid_spec=pltpu.PrefetchScalarGridSpec(
            num_scalar_prefetch=0,
            grid=(n_tiles,),
            in_specs=[
                pl.BlockSpec((tm, in_pad), lambda i: (i, 0)),        # batch-tiled x
                pl.BlockSpec((in_pad, hid_pad), lambda i: (0, 0)),   # resident w1
                pl.BlockSpec((hid_pad, act_pad), lambda i: (0, 0)),  # resident w2
            ],
            out_specs=pl.BlockSpec((tm, act_pad), lambda i: (i, 0)),
        ),
        compiler_params=pltpu.CompilerParams(
            dimension_semantics=("parallel",)),
        cost_estimate=pl.CostEstimate(
            flops=flops, transcendentals=0, bytes_accessed=bytes_accessed),
    )(xp, w1p, w2p)

    return out[:B, :nb_action]


def forward_jnp(state, w1, b1, w2, b2):
    """Plain-XLA reference / tiny-batch path (PyTorch forward semantics)."""
    return jnp.maximum(state @ w1 + b1[None, :], 0.0) @ w2 + b2[None, :]


def forward_mimic(state, w1p, w2p, input_size, nb_action):
    """Reference that applies the same low-precision rounding as the kernel."""
    dt = w1p.dtype
    xs = state.astype(dt).astype(jnp.float32)
    x_aug = jnp.concatenate([xs, jnp.ones((state.shape[0], 1), jnp.float32)], 1)
    w1f = w1p.astype(jnp.float32)[: input_size + 1]
    w2f = w2p.astype(jnp.float32)
    h = jnp.maximum(x_aug @ w1f, 0.0)
    q = h.astype(dt).astype(jnp.float32) @ w2f
    return q[:, :nb_action]


def init_params(key, input_size, nb_action, hidden=40):
    """PyTorch nn.Linear-style init: U[-1/sqrt(fan_in), 1/sqrt(fan_in)]."""
    k1, k2, k3, k4 = jax.random.split(key, 4)
    bound1 = 1.0 / jnp.sqrt(input_size)
    bound2 = 1.0 / jnp.sqrt(hidden)
    w1 = jax.random.uniform(k1, (input_size, hidden), jnp.float32, -bound1, bound1)
    b1 = jax.random.uniform(k2, (hidden,), jnp.float32, -bound1, bound1)
    w2 = jax.random.uniform(k3, (hidden, nb_action), jnp.float32, -bound2, bound2)
    b2 = jax.random.uniform(k4, (nb_action,), jnp.float32, -bound2, bound2)
    return w1, b1, w2, b2


class SDCNetwork:
    """JAX/Pallas port of the PyTorch `Network` (fc1 -> ReLU -> fc2)."""

    def __init__(self, w1, b1, w2, b2, compute_dtype=jnp.bfloat16):
        self.params = (w1, b1, w2, b2)
        self.input_size = w1.shape[0]
        self.nb_action = w2.shape[1]
        # Packed once here (NOT per forward call).
        self.w1p, self.w2p = pack_params(w1, b1, w2, b2, compute_dtype)

    def __call__(self, state, force_pallas=False):
        if state.shape[0] <= SMALL_BATCH_JNP and not force_pallas:
            return forward_jnp(state, *self.params)       # action-selection path
        return network_forward_pallas(state, self.w1p, self.w2p, self.nb_action)


if __name__ == "__main__":
    input_size = 5      # SDC: 3 sensor signals + orientation + (-orientation)
    nb_action = 3       # left / straight / right

    key = jax.random.PRNGKey(0)
    k_params, k_small, k_big = jax.random.split(key, 3)
    w1, b1, w2, b2 = init_params(k_params, input_size, nb_action)

    # --- Test 1: f32 packing, tiny batch -> exact check of kernel logic ----
    state = jax.random.normal(k_small, (4, input_size), jnp.float32)
    w1p32, w2p32 = pack_params(w1, b1, w2, b2, dtype=jnp.float32)
    q = network_forward_pallas(state, w1p32, w2p32, nb_action)
    jax.block_until_ready(q)
    ref = forward_jnp(state, w1, b1, w2, b2)
    assert q.shape == (4, nb_action)
    assert jnp.allclose(q, ref, atol=1e-5), "f32 kernel mismatch vs reference"

    # --- Test 2: bf16 packing (default), replay-sized multi-tile batch -----
    net = SDCNetwork(w1, b1, w2, b2)                       # bf16 compute
    big = jax.random.normal(k_big, (1030, input_size), jnp.float32)
    q_big = net(big)                                       # Pallas path, 2 tiles
    jax.block_until_ready(q_big)
    assert q_big.shape == (1030, nb_action)
    # Tight check vs a reference applying the same bf16 rounding as the kernel.
    ref_mimic = forward_mimic(big, net.w1p, net.w2p, input_size, nb_action)
    assert jnp.allclose(q_big, ref_mimic, atol=1e-3), "kernel logic mismatch (bf16)"
    # Loose semantic check vs the pure-f32 PyTorch-style forward.
    ref_big = forward_jnp(big, w1, b1, w2, b2)
    assert float(jnp.max(jnp.abs(q_big - ref_big))) < 0.2, "bf16 drift too large"

    # --- Test 3: tiny-batch dispatch uses plain XLA (no kernel launch) -----
    q_small = net(state)
    assert jnp.allclose(q_small, ref, atol=1e-6), "jnp dispatch mismatch"

    print("KERNEL_OK")
</pallas_src>

<mosaic_0001>
module attributes {stable_mosaic.version = 11 : i64} {
  func.func @_mlp_kernel(%arg0: i32, %arg1: memref<8x8xf32, #tpu.memory_space<vmem>>, %arg2: memref<8x48xf32, #tpu.memory_space<vmem>>, %arg3: memref<48x8xf32, #tpu.memory_space<vmem>>, %arg4: memref<8x8xf32, #tpu.memory_space<vmem>>) attributes {dimension_semantics = [#tpu.dimension_semantics<parallel>], iteration_bounds = array<i64: 1>, scalar_prefetch = 0 : i64, scratch_operands = 0 : i64, tpu.core_type = #tpu.core_type<tc>, window_params = [{transform_indices = @transform_0, window_bounds = array<i64: 8, 8>}, {pipeline_mode = #tpu.pipeline_mode<synchronous>, transform_indices = @transform_1, window_bounds = array<i64: 8, 48>}, {pipeline_mode = #tpu.pipeline_mode<synchronous>, transform_indices = @transform_2, window_bounds = array<i64: 48, 8>}, {transform_indices = @transform_3, window_bounds = array<i64: 8, 8>}]} {
    %c0 = arith.constant 0 : index
    %c0_0 = arith.constant 0 : index
    %0 = vector.load %arg1[%c0, %c0_0] : memref<8x8xf32, #tpu.memory_space<vmem>>, vector<8x8xf32>
    %c0_1 = arith.constant 0 : index
    %c0_2 = arith.constant 0 : index
    %1 = vector.load %arg2[%c0_1, %c0_2] : memref<8x48xf32, #tpu.memory_space<vmem>>, vector<8x48xf32>
    %cst = arith.constant dense<0.000000e+00> : vector<8x48xf32>
    %2 = tpu.matmul %0, %1, %cst {dimension_numbers = #tpu.dot_dimension_numbers<[1], [0], [0], [1], [0, 0, 1, 1], [], []>} : vector<8x8xf32>, vector<8x48xf32>, vector<8x48xf32> -> vector<8x48xf32>
    %cst_3 = arith.constant 0.000000e+00 : f32
    %3 = vector.broadcast %cst_3 : f32 to vector<8x48xf32>
    %4 = arith.maximumf %2, %3 : vector<8x48xf32>
    %c0_4 = arith.constant 0 : index
    %c0_5 = arith.constant 0 : index
    %5 = vector.load %arg3[%c0_4, %c0_5] : memref<48x8xf32, #tpu.memory_space<vmem>>, vector<48x8xf32>
    %cst_6 = arith.constant dense<0.000000e+00> : vector<8x8xf32>
    %6 = tpu.matmul %4, %5, %cst_6 {dimension_numbers = #tpu.dot_dimension_numbers<[1], [0], [0], [1], [0, 0, 1, 1], [], []>} : vector<8x48xf32>, vector<48x8xf32>, vector<8x8xf32> -> vector<8x8xf32>
    %c0_7 = arith.constant 0 : index
    %c0_8 = arith.constant 0 : index
    %7 = vector.load %arg4[%c0_7, %c0_8] : memref<8x8xf32, #tpu.memory_space<vmem>>, vector<8x8xf32>
    tpu.vector_store %arg4[%c0_7, %c0_8], %6 {strides = array<i32>} : memref<8x8xf32, #tpu.memory_space<vmem>>, vector<8x8xf32>,
    return
  }
  func.func @transform_0(%arg0: i32) -> (i32, i32) {
    %c0_i32 = arith.constant 0 : i32
    %c0_i32_0 = arith.constant 0 : i32
    return %arg0, %c0_i32 : i32, i32
  }
  func.func @transform_1(%arg0: i32) -> (i32, i32) {
    %c0_i32 = arith.constant 0 : i32
    %c0_i32_0 = arith.constant 0 : i32
    %c0_i32_1 = arith.constant 0 : i32
    return %c0_i32, %c0_i32_0 : i32, i32
  }
  func.func @transform_2(%arg0: i32) -> (i32, i32) {
    %c0_i32 = arith.constant 0 : i32
    %c0_i32_0 = arith.constant 0 : i32
    %c0_i32_1 = arith.constant 0 : i32
    return %c0_i32, %c0_i32_0 : i32, i32
  }
  func.func @transform_3(%arg0: i32) -> (i32, i32) {
    %c0_i32 = arith.constant 0 : i32
    %c0_i32_0 = arith.constant 0 : i32
    return %arg0, %c0_i32 : i32, i32
  }
}

</mosaic_0001>

<llo_original>
// kernel: tpu_custom_call.1
$region0: #{tpu_custom_call.1}
  #allocation0 [shape = 'u32[]', space=smem, size = 0x4, offset = 0x4, fixed_abs, tag = 'smem constant byte address 0x4 - core index']
  #allocation1 [shape = 'u32[144,128]{1,0:T(1,128)}', space=vmem, size = 0x12000, scoped, tag = 'internal scratch']
  %s0 = inlined_call_operand.vmem [shape: f32[8,8], index: 0, kind: input, shape index: {}]
  %s1 = inlined_call_operand.vmem [shape: f32[8,48], index: 1, kind: input, shape index: {}]
  %s2 = inlined_call_operand.vmem [shape: f32[48,8], index: 2, kind: input, shape index: {}]
  %s3 = inlined_call_operand.hbm [shape: f32[8,8], index: 3, kind: output, shape index: {}]
  %s4 = sld [smem:[#allocation0]]
  $region22: #{tpu_custom_call.1} parent=0
    _
  %s6 = ssub.s32 1, %s4
  %s7 = scalar_select 0, %s6, %s4
  $region1: #{tpu_custom_call.1} parent=0
    #allocation2 [shape = 'u8[4096]{0}', space=vmem, size = 0x1000, scoped, tag = 'output window, operand 0, single buffered']
    #allocation3 [shape = 's32[1]{0}', space=sflag, size = 0x4, scoped, tag = 'scoped memory for tpu_custom_call.1']
    %8 = vsyncpa [#allocation3], 0
    // Predicated region
    $region2: #{tpu_custom_call.1} parent=1 // pred_check
      _
    $region3: #{tpu_custom_call.1} parent=1 // pred_check_branch
      %10 = sbr.rel (0) target = $region5
    $region4: #{tpu_custom_call.1} parent=1 // pred_region
      _
    $region5: #{tpu_custom_call.1} parent=1 // pred_fallthru
      _
    // Predicated region
    $region6: #{tpu_custom_call.1} parent=1 // pred_check
      _
    $region7: #{tpu_custom_call.1} parent=1 // pred_check_branch
      %12 = sbr.rel (0) target = $region9
    $region8: #{tpu_custom_call.1} parent=1 // pred_region
      _
    $region9: #{tpu_custom_call.1} parent=1 // pred_fallthru
      _
    // Predicated region
    $region10: #{tpu_custom_call.1} parent=1 // pred_check
      _
    $region11: #{tpu_custom_call.1} parent=1 // pred_check_branch
      %14 = sbr.rel (0) target = $region13
    $region12: #{tpu_custom_call.1} parent=1 // pred_region
      _
    $region13: #{tpu_custom_call.1} parent=1 // pred_fallthru
      _
    %v15 = vld [vmem:[%s0] sm:$0xff]
    %v16 = vld [vmem:[%s1] sm:$0xff]
    %vm17 = vcmask 64512
    %v19 = vsel %vm17, %v15, 0
    %21 = vmatprep.subr.mxu0 0.0
    %22 = vmatpush1.msra.mxu0 %v16
    %23 = vmatprep.subr.mxu0 0.0
    %24 = vmatpush1.msra.mxu0 0.0
    %25 = vmatprep.subr.mxu0 0.0
    %26 = vmatpush1.msra.mxu0 0.0
    %27 = vmatprep.subr.mxu0 0.0
    %28 = vmatpush1.msra.mxu0 0.0
    %29 = vmatprep.subr.mxu0 0.0
    %30 = vmatpush1.msra.mxu0 0.0
    %31 = vmatprep.subr.mxu0 0.0
    %32 = vmatpush1.msra.mxu0 0.0
    %33 = vmatprep.subr.mxu0 0.0
    %34 = vmatpush1.msra.mxu0 0.0
    %35 = vmatprep.subr.mxu0 0.0
    %36 = vmatpush1.msra.mxu0 0.0
    %37 = vmatprep.subr.mxu0 0.0
    %38 = vmatpush1.msra.mxu0 0.0
    %39 = vmatprep.subr.mxu0 0.0
    %40 = vmatpush1.msra.mxu0 0.0
    %41 = vmatprep.subr.mxu0 0.0
    %42 = vmatpush1.msra.mxu0 0.0
    %43 = vmatprep.subr.mxu0 0.0
    %44 = vmatpush1.msra.mxu0 0.0
    %45 = vmatprep.subr.mxu0 0.0
    %46 = vmatpush1.msra.mxu0 0.0
    %47 = vmatprep.subr.mxu0 0.0
    %48 = vmatpush1.msra.mxu0 0.0
    %49 = vmatprep.subr.mxu0 0.0
    %50 = vmatpush1.msra.mxu0 0.0
    %51 = vmatprep.subr.mxu0 0.0
    %52 = vmatpush1.msra.mxu0 0.0
    %53 = vmatprep.subr.mxu0 0.0
    %54 = vmatpush1.msra.mxu0 0.0
    %55 = vmatprep.subr.mxu0 0.0
    %56 = vmatpush1.msra.mxu0 0.0
    %57 = vmatprep.subr.mxu0 0.0
    %58 = vmatpush1.msra.mxu0 0.0
    %59 = vmatprep.subr.mxu0 0.0
    %60 = vmatpush1.msra.mxu0 0.0
    %61 = vmatprep.subr.mxu0 0.0
    %62 = vmatpush1.msra.mxu0 0.0
    %63 = vmatprep.subr.mxu0 0.0
    %64 = vmatpush1.msra.mxu0 0.0
    %65 = vmatprep.subr.mxu0 0.0
    %66 = vmatpush1.msra.mxu0 0.0
    %67 = vmatprep.subr.mxu0 0.0
    %68 = vmatpush1.msra.mxu0 0.0
    %69 = vmatprep.subr.mxu0 0.0
    %70 = vmatpush1.msra.mxu0 0.0
    %71 = vmatprep.subr.mxu0 0.0
    %72 = vmatpush1.msra.mxu0 0.0
    %73 = vmatprep.subr.mxu0 0.0
    %74 = vmatpush1.msra.mxu0 0.0
    %75 = vmatprep.subr.mxu0 0.0
    %76 = vmatpush1.msra.mxu0 0.0
    %77 = vmatprep.subr.mxu0 0.0
    %78 = vmatpush1.msra.mxu0 0.0
    %79 = vmatprep.subr.mxu0 0.0
    %80 = vmatpush1.msra.mxu0 0.0
    %81 = vmatprep.subr.mxu0 0.0
    %82 = vmatpush1.msra.mxu0 0.0
    %83 = vmatprep.subr.mxu0 0.0
    %84 = vmatpush1.msra.mxu0 0.0
    %85 = vmatprep.mubr.f32.mxu0 0.0
    %86 = vmatmul.mubr.f32.gmra.mrb[0].mxu0 %v19
    %v87 = vpop.f32.mrb[0].mxu0
    %v88 = vadd.f32 0.0, %v87
    %v89 = vpop.f32.mrb[0].mxu0
    %90 = vdwg.mxu0
    %v91 = vmax.f32 %v88, 0.0
    %v92 = vld [vmem:[%s2] sm:$0xff]
    %v93 = vld [vmem:[%s2 + $0x8] sm:$0xff]
    %v94 = vld [vmem:[%s2 + $0x10] sm:$0xff]
    %v95 = vld [vmem:[%s2 + $0x18] sm:$0xff]
    %v96 = vld [vmem:[%s2 + $0x20] sm:$0xff]
    %v97 = vld [vmem:[%s2 + $0x28] sm:$0xff]
    %vm98 = vcmask 392192
    %v100 = vsel %vm98, %v91, 0
    %102 = vmatprep.subr.mxu0 0.0
    %103 = vmatpush1.msra.mxu0 %v92
    %104 = vmatprep.subr.mxu0 0.0
    %105 = vmatpush1.msra.mxu0 %v93
    %106 = vmatprep.subr.mxu0 0.0
    %107 = vmatpush1.msra.mxu0 %v94
    %108 = vmatprep.subr.mxu0 0.0
    %109 = vmatpush1.msra.mxu0 %v95
    %110 = vmatprep.subr.mxu0 0.0
    %111 = vmatpush1.msra.mxu0 %v96
    %112 = vmatprep.subr.mxu0 0.0
    %113 = vmatpush1.msra.mxu0 %v97
    %114 = vmatprep.subr.mxu0 0.0
    %115 = vmatpush1.msra.mxu0 0.0
    %116 = vmatprep.subr.mxu0 0.0
    %117 = vmatpush1.msra.mxu0 0.0
    %118 = vmatprep.subr.mxu0 0.0
    %119 = vmatpush1.msra.mxu0 0.0
    %120 = vmatprep.subr.mxu0 0.0
    %121 = vmatpush1.msra.mxu0 0.0
    %122 = vmatprep.subr.mxu0 0.0
    %123 = vmatpush1.msra.mxu0 0.0
    %124 = vmatprep.subr.mxu0 0.0
    %125 = vmatpush1.msra.mxu0 0.0
    %126 = vmatprep.subr.mxu0 0.0
    %127 = vmatpush1.msra.mxu0 0.0
    %128 = vmatprep.subr.mxu0 0.0
    %129 = vmatpush1.msra.mxu0 0.0
    %130 = vmatprep.subr.mxu0 0.0
    %131 = vmatpush1.msra.mxu0 0.0
    %132 = vmatprep.subr.mxu0 0.0
    %133 = vmatpush1.msra.mxu0 0.0
    %134 = vmatprep.subr.mxu0 0.0
    %135 = vmatpush1.msra.mxu0 0.0
    %136 = vmatprep.subr.mxu0 0.0
    %137 = vmatpush1.msra.mxu0 0.0
    %138 = vmatprep.subr.mxu0 0.0
    %139 = vmatpush1.msra.mxu0 0.0
    %140 = vmatprep.subr.mxu0 0.0
    %141 = vmatpush1.msra.mxu0 0.0
    %142 = vmatprep.subr.mxu0 0.0
    %143 = vmatpush1.msra.mxu0 0.0
    %144 = vmatprep.subr.mxu0 0.0
    %145 = vmatpush1.msra.mxu0 0.0
    %146 = vmatprep.subr.mxu0 0.0
    %147 = vmatpush1.msra.mxu0 0.0
    %148 = vmatprep.subr.mxu0 0.0
    %149 = vmatpush1.msra.mxu0 0.0
    %150 = vmatprep.subr.mxu0 0.0
    %151 = vmatpush1.msra.mxu0 0.0
    %152 = vmatprep.subr.mxu0 0.0
    %153 = vmatpush1.msra.mxu0 0.0
    %154 = vmatprep.subr.mxu0 0.0
    %155 = vmatpush1.msra.mxu0 0.0
    %156 = vmatprep.subr.mxu0 0.0
    %157 = vmatpush1.msra.mxu0 0.0
    %158 = vmatprep.subr.mxu0 0.0
    %159 = vmatpush1.msra.mxu0 0.0
    %160 = vmatprep.subr.mxu0 0.0
    %161 = vmatpush1.msra.mxu0 0.0
    %162 = vmatprep.subr.mxu0 0.0
    %163 = vmatpush1.msra.mxu0 0.0
    %164 = vmatprep.subr.mxu0 0.0
    %165 = vmatpush1.msra.mxu0 0.0
    %166 = vmatprep.mubr.f32.mxu0 0.0
    %167 = vmatmul.mubr.f32.gmra.mrb[0].mxu0 %v100
    %v168 = vpop.f32.mrb[0].mxu0
    %v169 = vadd.f32 0.0, %v168
    %v170 = vpop.f32.mrb[0].mxu0
    %171 = vdwg.mxu0
    %172 = vst.msk [vmem:[#allocation2] sm:$0xff] %vm17, %v169
    // Predicated region
    $region14: #{tpu_custom_call.1} parent=1 // pred_check
      _
    $region15: #{tpu_custom_call.1} parent=1 // pred_check_branch
      %174 = sbr.rel (0) target = $region17
    $region16: #{tpu_custom_call.1} parent=1 // pred_region
      %s176 = ssub.s32 128, 128
      %177 = vsyncadd [#allocation3], %s176
      %s179 = sshll.u32 [#allocation2], 4
      %s180 = int_to_ptr.vmem [resolvable:$true] %s179
      %182 = dma.vmem_to_hbm [thread:$0]  %s180, 128, %s3, [#allocation3]
    $region17: #{tpu_custom_call.1} parent=1 // pred_fallthru
      _
    // Predicated region
    $region18: #{tpu_custom_call.1} parent=1 // pred_check
      _
    $region19: #{tpu_custom_call.1} parent=1 // pred_check_branch
      %184 = sbr.rel (0) target = $region21
    $region20: #{tpu_custom_call.1} parent=1 // pred_region
      %185 = dma.done [#allocation3], 128
    $region21: #{tpu_custom_call.1} parent=1 // pred_fallthru
      _
    %186 = vsyncpa [#allocation3], 1

</llo_original>
